<compile_context>
chip_gen: v5e
topology: v5e:2x2
jax: 0.10.0
libtpu: 0.0.40
codegen_flags: <defaults>
</compile_context>

<pallas_src>
import math
import functools

import jax
import jax.numpy as jnp
from jax.experimental import pallas as pl
from jax.experimental.pallas import tpu as pltpu

LN_EPS = 1e-6        # module default layernorm_eps=1e-06
NEG_INF = -1e9

# Scoped-VMEM budget.  40 MiB fits v7x's 64 MiB physical VMEM/TC with headroom and
# is above v5e's 16 MiB / v6e's 32 MiB scoped defaults.  On v5e/v6e (128 MiB VMEM)
# raise this together with a larger query tile (e.g. tq=256, 96 MiB).
VMEM_LIMIT_BYTES = 40 * 1024 * 1024


# ------------------------------------------------------------------ kernels --

def embed_ln_kernel(tok_ref, seg_ref, pos_ref, g_ref, b_ref, o_ref):
    # fused embedding add + LayerNorm (saves one HBM round-trip of the [B,S,D] sum)
    x = tok_ref[0] + seg_ref[0] + pos_ref[...]                  # [S, D] f32
    mu = jnp.mean(x, axis=-1, keepdims=True)
    var = jnp.mean((x - mu) ** 2, axis=-1, keepdims=True)
    y = (x - mu) * jax.lax.rsqrt(var + LN_EPS) * g_ref[...] + b_ref[...]
    o_ref[0] = y.astype(o_ref.dtype)


def encoder_layer_kernel(head_num, d_k, single_tile, apply_out_mask, emit_att,
                         exp_bf16, *refs):
    refs = list(refs)
    xf_ref = None if single_tile else refs.pop(0)
    (xq_ref, mk_ref, mq_ref,
     wqkv_ref, bqkv_ref, wo_ref, bo_ref, g1_ref, be1_ref,
     w1_ref, b1_ref, w2_ref, b2_ref, g2_ref, be2_ref) = refs[:15]
    refs = refs[15:]
    out_ref = refs.pop(0)
    att_ref = refs.pop(0) if emit_att else None
    k_sc, v_sc = refs
    if xf_ref is None:            # single tile: the query tile IS the full sequence
        xf_ref = xq_ref

    hdk = head_num * d_k

    def split_heads(t):           # [N, H*d_k] -> [H, N, d_k] (layout-only)
        return jnp.stack([t[:, h * d_k:(h + 1) * d_k] for h in range(head_num)],
                         axis=0)

    # ---- K/V projected ONCE per batch row (query-tile 0) into bf16 VMEM scratch;
    # reused by every query tile (q grid axis is "arbitrary" so the scratch is
    # iterated in order and persists across the q loop on one core).
    @pl.when(pl.program_id(1) == 0)
    def _():
        xf_b = xf_ref[0].astype(jnp.bfloat16)                   # [S, D]
        kv = (jnp.dot(xf_b, wqkv_ref[:, hdk:3 * hdk],
                      preferred_element_type=jnp.float32)
              + bqkv_ref[:, hdk:3 * hdk])                       # [S, 2*hdk] f32
        k_sc[...] = split_heads(kv[:, 0:hdk]).astype(jnp.bfloat16)
        v_sc[...] = split_heads(kv[:, hdk:2 * hdk]).astype(jnp.bfloat16)

    # ---- Q projection for this query tile (1/sqrt(d_k) is pre-folded into the
    # Q columns of wqkv/bqkv at parameter-prep time — no in-kernel scale pass).
    xq = xq_ref[0]                                              # [TQ, D] f32
    q2 = (jnp.dot(xq.astype(jnp.bfloat16), wqkv_ref[:, 0:hdk],
                  preferred_element_type=jnp.float32)
          + bqkv_ref[:, 0:hdk])                                 # [TQ, hdk]
    qh = split_heads(q2).astype(jnp.bfloat16)                   # [H, TQ, d_k]

    # ---- head-batched attention: ONE QK^T and ONE PV dot_general for all heads
    s = jnp.einsum('hqd,hkd->hqk', qh, k_sc[...],
                   preferred_element_type=jnp.float32)          # [H, TQ, S] f32

    # additive key mask, hoisted: one compare + broadcast shared by every head
    mask_add = jnp.where(mk_ref[0] == 0.0, NEG_INF, 0.0)        # [1, S]
    s = s + mask_add[None, :, :]

    m = jnp.max(s, axis=-1, keepdims=True)
    if exp_bf16:
        # exp in bf16 (EUP ~2x throughput on v6e/v7x); max/denominator stay f32.
        # Set exp_bf16=False on v5e (no bf16 EUP).
        e = jnp.exp((s - m).astype(jnp.bfloat16))
    else:
        e = jnp.exp(s - m)
    denom = jnp.sum(e.astype(jnp.float32), axis=-1, keepdims=True)
    inv = pl.reciprocal(denom, approx=True)                     # EUP vrcp
    p = e * inv.astype(e.dtype)                                 # [H, TQ, S]
    if emit_att:
        att_ref[0] = p.astype(att_ref.dtype)

    ctx = jnp.einsum('hqk,hkd->hqd', p.astype(jnp.bfloat16), v_sc[...],
                     preferred_element_type=jnp.float32)        # [H, TQ, d_k]
    ctx2 = jnp.concatenate([ctx[h] for h in range(head_num)], axis=-1)  # [TQ, hdk]
    att_out = (jnp.dot(ctx2.astype(jnp.bfloat16), wo_ref[...],
                       preferred_element_type=jnp.float32) + bo_ref[...])

    # ---- residual + LayerNorm 1 (f32; dropout = identity in eval mode)
    h1 = xq + att_out
    mu1 = jnp.mean(h1, axis=-1, keepdims=True)
    var1 = jnp.mean((h1 - mu1) ** 2, axis=-1, keepdims=True)
    ln1 = (h1 - mu1) * jax.lax.rsqrt(var1 + LN_EPS) * g1_ref[...] + be1_ref[...]

    # ---- position-wise feed forward (bf16 matmuls, f32 accumulation)
    # TODO(synk): FFN activation assumed ReLU; swap to GELU if the original used it.
    f = (jnp.dot(ln1.astype(jnp.bfloat16), w1_ref[...],
                 preferred_element_type=jnp.float32) + b1_ref[...])
    f = jnp.maximum(f, 0.0)
    ff = (jnp.dot(f.astype(jnp.bfloat16), w2_ref[...],
                  preferred_element_type=jnp.float32) + b2_ref[...])

    # ---- residual + LayerNorm 2 (f32)
    h2 = ln1 + ff
    mu2 = jnp.mean(h2, axis=-1, keepdims=True)
    var2 = jnp.mean((h2 - mu2) ** 2, axis=-1, keepdims=True)
    ln2 = (h2 - mu2) * jax.lax.rsqrt(var2 + LN_EPS) * g2_ref[...] + be2_ref[...]

    if apply_out_mask:
        # fused final out.masked_fill(masks == 0, 0) — only on the last layer
        ln2 = jnp.where(mq_ref[0] == 0.0, 0.0, ln2)
    out_ref[0] = ln2.astype(out_ref.dtype)


# ----------------------------------------------------------------- wrappers --

def input_embedding(params, input_ids, seg_ids):
    B, S = input_ids.shape
    D = params["tok_emb"].shape[1]
    # TODO(synk): embedding gathers stay in plain JAX; could be fused into the
    # kernel via scalar-prefetch + pl.Element row gather to save one-time HBM traffic.
    tok = jnp.take(params["tok_emb"], input_ids, axis=0)        # [B, S, D]
    seg = jnp.take(params["seg_emb"], seg_ids, axis=0)          # [B, S, D]
    pos = params["pos_emb"][:S]                                 # [S, D]
    return pl.pallas_call(
        embed_ln_kernel,
        out_shape=jax.ShapeDtypeStruct((B, S, D), jnp.float32),
        grid_spec=pltpu.PrefetchScalarGridSpec(
            num_scalar_prefetch=0,
            grid=(B,),
            in_specs=[
                pl.BlockSpec((1, S, D), lambda b: (b, 0, 0)),
                pl.BlockSpec((1, S, D), lambda b: (b, 0, 0)),
                pl.BlockSpec((S, D), lambda b: (0, 0)),
                pl.BlockSpec((1, D), lambda b: (0, 0)),
                pl.BlockSpec((1, D), lambda b: (0, 0)),
            ],
            out_specs=pl.BlockSpec((1, S, D), lambda b: (b, 0, 0)),
        ),
        compiler_params=pltpu.CompilerParams(
            dimension_semantics=("parallel",),
            vmem_limit_bytes=VMEM_LIMIT_BYTES),
    )(tok, seg, pos, params["emb_ln_g"], params["emb_ln_b"])


def encoder_layer(x, mask_k, mask_q, lp, head_num, d_k, tq, apply_out_mask,
                  att_dtype=jnp.bfloat16, emit_att=True, exp_bf16=True):
    B, S, D = x.shape
    hdk = head_num * d_k
    d_ff = lp["w1"].shape[1]
    assert S % tq == 0 and (tq % 8 == 0 or tq == S), "query tile must divide S (mult of 8)"
    nq = S // tq
    single_tile = (nq == 1)

    def wspec(shape):
        # grid-invariant weight block: block index never changes, so the block is
        # DMA'd once and stays resident across all grid steps.  (On v7x, if VMEM
        # is tight, single-buffer these with pipeline_mode=pl.Buffered(1) or split
        # attention/FFN into two pallas_calls.)
        return pl.BlockSpec(shape, lambda *_: (0,) * len(shape))

    in_specs = []
    args = []
    if not single_tile:
        # full sequence (for the once-per-row K/V projection); block index is
        # constant over q so it is not re-DMA'd per query tile.
        in_specs.append(pl.BlockSpec((1, S, D), lambda b, q: (b, 0, 0)))
        args.append(x)
    in_specs += [
        pl.BlockSpec((1, tq, D), lambda b, q: (b, q, 0)),       # query tile
        pl.BlockSpec((1, 1, S), lambda b, q: (b, 0, 0)),        # key mask
        pl.BlockSpec((1, tq, 1), lambda b, q: (b, q, 0)),       # query-row mask (final fill)
        wspec((D, 3 * hdk)), wspec((1, 3 * hdk)),               # fused QKV weight / bias
        wspec((hdk, D)), wspec((1, D)),                         # output projection
        wspec((1, D)), wspec((1, D)),                           # LN1 gamma / beta
        wspec((D, d_ff)), wspec((1, d_ff)),                     # FFN up
        wspec((d_ff, D)), wspec((1, D)),                        # FFN down
        wspec((1, D)), wspec((1, D)),                           # LN2 gamma / beta
    ]
    args += [x, mask_k, mask_q,
             lp["wqkv"], lp["bqkv"], lp["wo"], lp["bo"], lp["ln1_g"], lp["ln1_b"],
             lp["w1"], lp["b1"], lp["w2"], lp["b2"], lp["ln2_g"], lp["ln2_b"]]

    out_specs = [pl.BlockSpec((1, tq, D), lambda b, q: (b, q, 0))]
    out_shape = [jax.ShapeDtypeStruct((B, S, D), jnp.float32)]
    if emit_att:
        out_specs.append(pl.BlockSpec((1, head_num, tq, S), lambda b, q: (b, 0, q, 0)))
        out_shape.append(jax.ShapeDtypeStruct((B, head_num, S, S), att_dtype))

    kernel = functools.partial(encoder_layer_kernel, head_num, d_k,
                               single_tile, apply_out_mask, emit_att, exp_bf16)
    res = pl.pallas_call(
        kernel,
        out_shape=out_shape,
        grid_spec=pltpu.PrefetchScalarGridSpec(
            num_scalar_prefetch=0,
            grid=(B, nq),
            in_specs=in_specs,
            out_specs=out_specs,
            scratch_shapes=[pltpu.VMEM((head_num, S, d_k), jnp.bfloat16),  # K cache
                            pltpu.VMEM((head_num, S, d_k), jnp.bfloat16)], # V cache
        ),
        compiler_params=pltpu.CompilerParams(
            # B is megacore-parallel (v7x); q must be "arbitrary" so the per-row
            # K/V scratch filled at q == 0 is iterated in order on one core.
            dimension_semantics=("parallel", "arbitrary"),
            vmem_limit_bytes=VMEM_LIMIT_BYTES),
    )(*args)
    if emit_att:
        out, att = res
        return out, att
    return res[0], None


# ------------------------------------------------------------- params / fwd --

def init_params(key, vocab_num, seg_num, layer_num, head_num, max_seq_len,
                d_model, d_k, d_ff):
    hdk = head_num * d_k
    scale = 1.0 / math.sqrt(d_k)
    keys = iter(jax.random.split(key, 3 + layer_num * 4))

    def nrm(shape, std=0.02):
        return std * jax.random.normal(next(keys), shape, dtype=jnp.float32)

    params = {
        "tok_emb": nrm((vocab_num, d_model)),
        "seg_emb": nrm((seg_num, d_model)),
        "pos_emb": nrm((max_seq_len, d_model)),
        "emb_ln_g": jnp.ones((1, d_model), jnp.float32),
        "emb_ln_b": jnp.zeros((1, d_model), jnp.float32),
        "layers": [],
    }
    for _ in range(layer_num):
        wqkv = nrm((d_model, 3 * hdk))
        # fold 1/sqrt(d_k) into the Q projection at parameter-prep time
        # (when loading real torch weights, scale b_q the same way).
        wqkv = jnp.concatenate([wqkv[:, :hdk] * scale, wqkv[:, hdk:]], axis=1)
        params["layers"].append({
            # matmul weights stored bf16 (MXU-native); biases / LN params f32
            "wqkv": wqkv.astype(jnp.bfloat16),
            "bqkv": jnp.zeros((1, 3 * hdk), jnp.float32),
            "wo": nrm((hdk, d_model)).astype(jnp.bfloat16),
            "bo": jnp.zeros((1, d_model), jnp.float32),
            "ln1_g": jnp.ones((1, d_model), jnp.float32),
            "ln1_b": jnp.zeros((1, d_model), jnp.float32),
            "w1": nrm((d_model, d_ff)).astype(jnp.bfloat16),
            "b1": jnp.zeros((1, d_ff), jnp.float32),
            "w2": nrm((d_ff, d_model)).astype(jnp.bfloat16),
            "b2": jnp.zeros((1, d_model), jnp.float32),
            "ln2_g": jnp.ones((1, d_model), jnp.float32),
            "ln2_b": jnp.zeros((1, d_model), jnp.float32),
        })
    return params


def pick_tq(S, cap=128):
    """Largest multiple of 8 <= cap that divides S (bounded query tile)."""
    if S <= cap:
        return S
    for t in range(cap - cap % 8, 7, -8):
        if S % t == 0:
            return t
    return S


def encoder_forward(params, input_ids, seg_ids, masks, head_num, d_k,
                    tq=None, att_dtype=jnp.bfloat16, return_att=True,
                    exp_bf16=True):
    B, S = input_ids.shape
    x = input_embedding(params, input_ids, seg_ids)

    if tq is None:
        # bounded default so the single-tile ([H,S,S]-resident) path is never hit at
        # production sequence lengths; raise cap to 256 on v5e/v6e (128 MiB VMEM).
        tq = pick_tq(S, cap=128)
    mask_f = masks.astype(jnp.float32)
    mask_k = mask_f.reshape(B, 1, S)                # key mask (broadcast over queries)
    mask_q = mask_f.reshape(B, S, 1)                # query-row mask (final fill)

    n_layers = len(params["layers"])
    att_score_list = []
    for i, lp in enumerate(params["layers"]):
        x, att = encoder_layer(x, mask_k, mask_q, lp, head_num, d_k, tq,
                               apply_out_mask=(i == n_layers - 1),
                               att_dtype=att_dtype, emit_att=return_att,
                               exp_bf16=exp_bf16)
        if return_att:
            att_score_list.append(att)
    # final masked_fill(masks==0, 0) is fused into the last layer's kernel
    return x, att_score_list


# --------------------------------------------------------------------- main --

if __name__ == "__main__":
    vocab_num, seg_num = 100, 2
    layer_num, head_num = 2, 2
    max_seq_len, d_model, d_k, d_ff = 16, 32, 16, 64
    B, S = 2, max_seq_len
    TQ = 8          # exercises the query-tiled path (grid (B, S//TQ)) + K/V VMEM cache

    key = jax.random.PRNGKey(0)
    pkey, ikey, skey = jax.random.split(key, 3)
    params = init_params(pkey, vocab_num, seg_num, layer_num, head_num,
                         max_seq_len, d_model, d_k, d_ff)

    valid = 5
    masks = jnp.array([[1] * S, [1] * valid + [0] * (S - valid)], dtype=jnp.int32)
    input_ids = jax.random.randint(ikey, (B, S), 0, vocab_num, dtype=jnp.int32) * masks
    seg_ids = jax.random.randint(skey, (B, S), 0, seg_num, dtype=jnp.int32) * masks

    # --- tiled path: K/V projected once per row and cached in VMEM scratch ---
    out, att_score_list = encoder_forward(params, input_ids, seg_ids, masks,
                                          head_num, d_k, tq=TQ)
    out = jax.block_until_ready(out)
    att_score_list = [jax.block_until_ready(a) for a in att_score_list]

    assert out.shape == (B, S, d_model)
    assert len(att_score_list) == layer_num
    assert att_score_list[0].shape == (B, head_num, S, S)
    assert bool(jnp.all(jnp.isfinite(out)))
    # padded positions must be zeroed in the final output (fused masked_fill)
    assert bool(jnp.all(out[1, valid:, :] == 0.0))
    # attention rows should (approximately) sum to 1 (bf16 probs + approx recip)
    row_sums = jnp.sum(att_score_list[0].astype(jnp.float32), axis=-1)
    assert bool(jnp.all(jnp.abs(row_sums - 1.0) < 5e-2))

    # --- single-tile path (tq == S): no duplicate full-seq input, no att output ---
    out2, _ = encoder_forward(params, input_ids, seg_ids, masks, head_num, d_k,
                              tq=None, return_att=False)
    out2 = jax.block_until_ready(out2)
    assert out2.shape == (B, S, d_model)
    assert bool(jnp.all(jnp.isfinite(out2)))
    # both paths compute the same math (bf16 matmuls -> small tolerance)
    assert bool(jnp.max(jnp.abs(out2 - out)) < 1e-2)

    print("KERNEL_OK")
</pallas_src>

<mosaic_0001>
module attributes {stable_mosaic.version = 11 : i64} {
  func.func @embed_ln_kernel(%arg0: i32, %arg1: memref<1x16x32xf32, #tpu.memory_space<vmem>>, %arg2: memref<1x16x32xf32, #tpu.memory_space<vmem>>, %arg3: memref<16x32xf32, #tpu.memory_space<vmem>>, %arg4: memref<1x32xf32, #tpu.memory_space<vmem>>, %arg5: memref<1x32xf32, #tpu.memory_space<vmem>>, %arg6: memref<1x16x32xf32, #tpu.memory_space<vmem>>) attributes {dimension_semantics = [#tpu.dimension_semantics<parallel>], iteration_bounds = array<i64: 2>, scalar_prefetch = 0 : i64, scratch_operands = 0 : i64, tpu.core_type = #tpu.core_type<tc>, window_params = [{transform_indices = @transform_0, window_bounds = array<i64: 1, 16, 32>}, {transform_indices = @transform_1, window_bounds = array<i64: 1, 16, 32>}, {pipeline_mode = #tpu.pipeline_mode<synchronous>, transform_indices = @transform_2, window_bounds = array<i64: 16, 32>}, {pipeline_mode = #tpu.pipeline_mode<synchronous>, transform_indices = @transform_3, window_bounds = array<i64: 1, 32>}, {pipeline_mode = #tpu.pipeline_mode<synchronous>, transform_indices = @transform_4, window_bounds = array<i64: 1, 32>}, {transform_indices = @transform_5, window_bounds = array<i64: 1, 16, 32>}]} {
    %c0 = arith.constant 0 : index
    %c0_0 = arith.constant 0 : index
    %c0_1 = arith.constant 0 : index
    %0 = vector.load %arg1[%c0, %c0_0, %c0_1] : memref<1x16x32xf32, #tpu.memory_space<vmem>>, vector<1x16x32xf32>
    %1 = vector.shape_cast %0 : vector<1x16x32xf32> to vector<16x32xf32>
    %c0_2 = arith.constant 0 : index
    %c0_3 = arith.constant 0 : index
    %c0_4 = arith.constant 0 : index
    %2 = vector.load %arg2[%c0_2, %c0_3, %c0_4] : memref<1x16x32xf32, #tpu.memory_space<vmem>>, vector<1x16x32xf32>
    %3 = vector.shape_cast %2 : vector<1x16x32xf32> to vector<16x32xf32>
    %4 = arith.addf %1, %3 : vector<16x32xf32>
    %c0_5 = arith.constant 0 : index
    %c0_6 = arith.constant 0 : index
    %5 = vector.load %arg3[%c0_5, %c0_6] : memref<16x32xf32, #tpu.memory_space<vmem>>, vector<16x32xf32>
    %6 = arith.addf %4, %5 : vector<16x32xf32>
    %cst = arith.constant dense<0.000000e+00> : vector<16xf32>
    %7 = vector.multi_reduction <add>, %6, %cst [1] : vector<16x32xf32> to vector<16xf32>
    %8 = vector.shape_cast %7 : vector<16xf32> to vector<16x1xf32>
    %cst_7 = arith.constant 3.200000e+01 : f32
    %9 = vector.broadcast %cst_7 : f32 to vector<16x1xf32>
    %10 = arith.divf %8, %9 : vector<16x1xf32>
    %11 = vector.broadcast %10 : vector<16x1xf32> to vector<16x32xf32>
    %12 = arith.subf %6, %11 : vector<16x32xf32>
    %13 = arith.mulf %12, %12 : vector<16x32xf32>
    %cst_8 = arith.constant dense<0.000000e+00> : vector<16xf32>
    %14 = vector.multi_reduction <add>, %13, %cst_8 [1] : vector<16x32xf32> to vector<16xf32>
    %15 = vector.shape_cast %14 : vector<16xf32> to vector<16x1xf32>
    %cst_9 = arith.constant 3.200000e+01 : f32
    %16 = vector.broadcast %cst_9 : f32 to vector<16x1xf32>
    %17 = arith.divf %15, %16 : vector<16x1xf32>
    %18 = vector.broadcast %10 : vector<16x1xf32> to vector<16x32xf32>
    %19 = arith.subf %6, %18 : vector<16x32xf32>
    %cst_10 = arith.constant 9.99999997E-7 : f32
    %20 = vector.broadcast %cst_10 : f32 to vector<16x1xf32>
    %21 = arith.addf %17, %20 : vector<16x1xf32>
    %22 = math.rsqrt %21 : vector<16x1xf32>
    %23 = vector.broadcast %22 : vector<16x1xf32> to vector<16x32xf32>
    %24 = arith.mulf %19, %23 : vector<16x32xf32>
    %c0_11 = arith.constant 0 : index
    %c0_12 = arith.constant 0 : index
    %25 = vector.load %arg4[%c0_11, %c0_12] : memref<1x32xf32, #tpu.memory_space<vmem>>, vector<1x32xf32>
    %26 = vector.broadcast %25 : vector<1x32xf32> to vector<16x32xf32>
    %27 = arith.mulf %24, %26 : vector<16x32xf32>
    %c0_13 = arith.constant 0 : index
    %c0_14 = arith.constant 0 : index
    %28 = vector.load %arg5[%c0_13, %c0_14] : memref<1x32xf32, #tpu.memory_space<vmem>>, vector<1x32xf32>
    %29 = vector.broadcast %28 : vector<1x32xf32> to vector<16x32xf32>
    %30 = arith.addf %27, %29 : vector<16x32xf32>
    %c0_15 = arith.constant 0 : index
    %c0_16 = arith.constant 0 : index
    %c0_17 = arith.constant 0 : index
    %31 = vector.load %arg6[%c0_15, %c0_16, %c0_17] : memref<1x16x32xf32, #tpu.memory_space<vmem>>, vector<1x16x32xf32>
    %32 = vector.shape_cast %31 : vector<1x16x32xf32> to vector<16x32xf32>
    %33 = vector.shape_cast %30 : vector<16x32xf32> to vector<1x16x32xf32>
    tpu.vector_store %arg6[%c0_15, %c0_16, %c0_17], %33 {strides = array<i32>} : memref<1x16x32xf32, #tpu.memory_space<vmem>>, vector<1x16x32xf32>,
    return
  }
  func.func @transform_0(%arg0: i32) -> (i32, i32, i32) {
    %c0_i32 = arith.constant 0 : i32
    %c0_i32_0 = arith.constant 0 : i32
    %c0_i32_1 = arith.constant 0 : i32
    return %arg0, %c0_i32, %c0_i32_0 : i32, i32, i32
  }
  func.func @transform_1(%arg0: i32) -> (i32, i32, i32) {
    %c0_i32 = arith.constant 0 : i32
    %c0_i32_0 = arith.constant 0 : i32
    %c0_i32_1 = arith.constant 0 : i32
    return %arg0, %c0_i32, %c0_i32_0 : i32, i32, i32
  }
  func.func @transform_2(%arg0: i32) -> (i32, i32) {
    %c0_i32 = arith.constant 0 : i32
    %c0_i32_0 = arith.constant 0 : i32
    %c0_i32_1 = arith.constant 0 : i32
    return %c0_i32, %c0_i32_0 : i32, i32
  }
  func.func @transform_3(%arg0: i32) -> (i32, i32) {
    %c0_i32 = arith.constant 0 : i32
    %c0_i32_0 = arith.constant 0 : i32
    %c0_i32_1 = arith.constant 0 : i32
    return %c0_i32, %c0_i32_0 : i32, i32
  }
  func.func @transform_4(%arg0: i32) -> (i32, i32) {
    %c0_i32 = arith.constant 0 : i32
    %c0_i32_0 = arith.constant 0 : i32
    %c0_i32_1 = arith.constant 0 : i32
    return %c0_i32, %c0_i32_0 : i32, i32
  }
  func.func @transform_5(%arg0: i32) -> (i32, i32, i32) {
    %c0_i32 = arith.constant 0 : i32
    %c0_i32_0 = arith.constant 0 : i32
    %c0_i32_1 = arith.constant 0 : i32
    return %arg0, %c0_i32, %c0_i32_0 : i32, i32, i32
  }
}

</mosaic_0001>

<llo_original>
// kernel: tpu_custom_call.1
$region0: #{tpu_custom_call.1}
  #allocation0 [shape = 'u32[]', space=smem, size = 0x4, offset = 0x4, fixed_abs, tag = 'smem constant byte address 0x4 - core index']
  #allocation1 [shape = 'u32[72,128]{1,0:T(1,128)}', space=vmem, size = 0x9000, scoped, tag = 'internal scratch']
  %s0 = inlined_call_operand.hbm [shape: f32[2,16,32], index: 0, kind: input, shape index: {}]
  %s1 = inlined_call_operand.hbm [shape: f32[2,16,32], index: 1, kind: input, shape index: {}]
  %s2 = inlined_call_operand.hbm [shape: f32[16,32], index: 2, kind: input, shape index: {}]
  %s3 = inlined_call_operand.vmem [shape: f32[1,32], index: 3, kind: input, shape index: {}]
  %s4 = inlined_call_operand.vmem [shape: f32[1,32], index: 4, kind: input, shape index: {}]
  %s5 = inlined_call_operand.hbm [shape: f32[2,16,32], index: 5, kind: output, shape index: {}]
  %s6 = sld [smem:[#allocation0]]
  $region65: #{tpu_custom_call.1} parent=0
    _
  %s8 = ssub.s32 1, %s6
  %s9 = scalar_select 0, %s8, %s6
  $region1: #{tpu_custom_call.1} parent=0
    #allocation2 [shape = 'u8[16384]{0}', space=vmem, size = 0x4000, scoped, tag = 'input window, operand 0']
    #allocation3 [shape = 's32[2]{0}', space=sflag, size = 0x8, scoped, tag = 'scoped memory for tpu_custom_call.1']
    #allocation4 [shape = 's32[2]{0}', space=sflag, size = 0x8, scoped, tag = 'scoped memory for tpu_custom_call.1']
    #allocation5 [shape = 'u8[16384]{0}', space=vmem, size = 0x4000, scoped, tag = 'input window, operand 1']
    #allocation6 [shape = 's32[2]{0}', space=sflag, size = 0x8, scoped, tag = 'scoped memory for tpu_custom_call.1']
    #allocation7 [shape = 'u8[8192]{0}', space=vmem, size = 0x2000, scoped, tag = 'input window, operand 2, single buffered']
    #allocation8 [shape = 'u8[16384]{0}', space=vmem, size = 0x4000, scoped, tag = 'output window, operand 0']
    %10 = vsyncpa [#allocation3], 0
    %s11 = scalar_lea.sflag [#allocation3], 1
    %12 = vsyncpa %s11, 0
    %13 = vsyncpa [#allocation6], 0
    %s14 = scalar_lea.sflag [#allocation6], 1
    %15 = vsyncpa %s14, 0
    %16 = vsyncpa [#allocation4], 0
    %s17 = scalar_lea.sflag [#allocation4], 1
    %18 = vsyncpa %s17, 0
    loop: start=0, step=1, limit=4
    $region2: #{tpu_custom_call.1} parent=1 // loop_pre_header
      _
    $region3: #{tpu_custom_call.1} parent=1 // loop_header
      %s20 = sphi 0, %s24
      %p21 = scmp.ge.s32.totalorder %s20, 4
      %s30 = sphi 0, %s32
      %s33 = sphi 0, %s30
      %s34 = sphi 0, %s33
      %s50 = sphi 0, %s34
      %s56 = sphi 0, %s58
      %s59 = sphi 0, %s56
      %s60 = sphi 0, %s59
      %s76 = sphi 0, %s60
      %s80 = sphi 0, %s80
      %s82 = sphi 0, %s80
      %s83 = sphi 0, %s82
      %s97 = sphi 0, %s83
      %s101 = sphi 0, %s101
      %s103 = sphi 0, %s101
      %s104 = sphi 0, %s103
      %s118 = sphi 0, %s104
      %s122 = sphi 0, %s122
      %s124 = sphi 0, %s122
      %s125 = sphi 0, %s124
      %s139 = sphi 0, %s125
      %s145 = sphi 0, %s147
      %s148 = sphi 0, %s145
      %s149 = sphi 0, %s148
      %s165 = sphi 0, %s149
    $region4: #{tpu_custom_call.1} parent=1 // loop_header_branch
      %23 = sbr.rel (%p21) target = $region8
    $region5: #{tpu_custom_call.1} parent=1 // loop_body
      %s25 = ssub.s32 %s20, 1
      %s26 = ssub.s32 %s20, 2
      %s27 = sadd.s32 %s20, 1
      %s28 = ssub.s32 %s20, %s27
      %p29 = scmp.eq.s32.totalorder %s28, 0
      %s31 = sadd.s32 %s30, 1
      %s32 = scalar_select %p29, %s30, %s31
      %p35 = pneg %p29
      %p36 = scmp.eq.s32.totalorder %s20, 1
      %p37 = por %p35, %p36
      %p38 = scmp.ne.s32.totalorder %s30, %s33
      %p39 = scmp.eq.s32.totalorder %s20, 0
      %p40 = por %p38, %p39
      %p41 = scmp.ne.s32.totalorder %s30, %s33
      %p42 = scmp.eq.s32.totalorder %s25, 1
      %p43 = por %p41, %p42
      %p44 = scmp.ne.s32.totalorder %s33, %s34
      %p45 = scmp.eq.s32.totalorder %s25, 0
      %p46 = por %p44, %p45
      %p47 = scmp.ne.s32.totalorder %s33, %s34
      %p48 = scmp.eq.s32.totalorder %s26, 1
      %p49 = por %p47, %p48
      %p51 = scmp.ne.s32.totalorder %s34, %s50
      %p52 = scmp.eq.s32.totalorder %s26, 0
      %p53 = por %p51, %p52
      %s54 = ssub.s32 %s20, %s27
      %p55 = scmp.eq.s32.totalorder %s54, 0
      %s57 = sadd.s32 %s56, 1
      %s58 = scalar_select %p55, %s56, %s57
      %p61 = pneg %p55
      %p62 = scmp.eq.s32.totalorder %s20, 1
      %p63 = por %p61, %p62
      %p64 = scmp.ne.s32.totalorder %s56, %s59
      %p65 = scmp.eq.s32.totalorder %s20, 0
      %p66 = por %p64, %p65
      %p67 = scmp.ne.s32.totalorder %s56, %s59
      %p68 = scmp.eq.s32.totalorder %s25, 1
      %p69 = por %p67, %p68
      %p70 = scmp.ne.s32.totalorder %s59, %s60
      %p71 = scmp.eq.s32.totalorder %s25, 0
      %p72 = por %p70, %p71
      %p73 = scmp.ne.s32.totalorder %s59, %s60
      %p74 = scmp.eq.s32.totalorder %s26, 1
      %p75 = por %p73, %p74
      %p77 = scmp.ne.s32.totalorder %s60, %s76
      %p78 = scmp.eq.s32.totalorder %s26, 0
      %p79 = por %p77, %p78
      %s81 = sadd.s32 %s80, 1
      %p84 = scmp.eq.s32.totalorder %s20, 1
      %p85 = scmp.ne.s32.totalorder %s80, %s82
      %p86 = scmp.eq.s32.totalorder %s20, 0
      %p87 = por %p85, %p86
      %p88 = scmp.ne.s32.totalorder %s80, %s82
      %p89 = scmp.eq.s32.totalorder %s25, 1
      %p90 = por %p88, %p89
      %p91 = scmp.ne.s32.totalorder %s82, %s83
      %p92 = scmp.eq.s32.totalorder %s25, 0
      %p93 = por %p91, %p92
      %p94 = scmp.ne.s32.totalorder %s82, %s83
      %p95 = scmp.eq.s32.totalorder %s26, 1
      %p96 = por %p94, %p95
      %p98 = scmp.ne.s32.totalorder %s83, %s97
      %p99 = scmp.eq.s32.totalorder %s26, 0
      %p100 = por %p98, %p99
      %s102 = sadd.s32 %s101, 1
      %p105 = scmp.eq.s32.totalorder %s20, 1
      %p106 = scmp.ne.s32.totalorder %s101, %s103
      %p107 = scmp.eq.s32.totalorder %s20, 0
      %p108 = por %p106, %p107
      %p109 = scmp.ne.s32.totalorder %s101, %s103
      %p110 = scmp.eq.s32.totalorder %s25, 1
      %p111 = por %p109, %p110
      %p112 = scmp.ne.s32.totalorder %s103, %s104
      %p113 = scmp.eq.s32.totalorder %s25, 0
      %p114 = por %p112, %p113
      %p115 = scmp.ne.s32.totalorder %s103, %s104
      %p116 = scmp.eq.s32.totalorder %s26, 1
      %p117 = por %p115, %p116
      %p119 = scmp.ne.s32.totalorder %s104, %s118
      %p120 = scmp.eq.s32.totalorder %s26, 0
      %p121 = por %p119, %p120
      %s123 = sadd.s32 %s122, 1
      %p126 = scmp.eq.s32.totalorder %s20, 1
      %p127 = scmp.ne.s32.totalorder %s122, %s124
      %p128 = scmp.eq.s32.totalorder %s20, 0
      %p129 = por %p127, %p128
      %p130 = scmp.ne.s32.totalorder %s122, %s124
      %p131 = scmp.eq.s32.totalorder %s25, 1
      %p132 = por %p130, %p131
      %p133 = scmp.ne.s32.totalorder %s124, %s125
      %p134 = scmp.eq.s32.totalorder %s25, 0
      %p135 = por %p133, %p134
      %p136 = scmp.ne.s32.totalorder %s124, %s125
      %p137 = scmp.eq.s32.totalorder %s26, 1
      %p138 = por %p136, %p137
      %p140 = scmp.ne.s32.totalorder %s125, %s139
      %p141 = scmp.eq.s32.totalorder %s26, 0
      %p142 = por %p140, %p141
      %s143 = ssub.s32 %s20, %s27
      %p144 = scmp.eq.s32.totalorder %s143, 0
      %s146 = sadd.s32 %s145, 1
      %s147 = scalar_select %p144, %s145, %s146
      %p150 = pneg %p144
      %p151 = scmp.eq.s32.totalorder %s20, 1
      %p152 = por %p150, %p151
      %p153 = scmp.ne.s32.totalorder %s145, %s148
      %p154 = scmp.eq.s32.totalorder %s20, 0
      %p155 = por %p153, %p154
      %p156 = scmp.ne.s32.totalorder %s145, %s148
      %p157 = scmp.eq.s32.totalorder %s25, 1
      %p158 = por %p156, %p157
      %p159 = scmp.ne.s32.totalorder %s148, %s149
      %p160 = scmp.eq.s32.totalorder %s25, 0
      %p161 = por %p159, %p160
      %p162 = scmp.ne.s32.totalorder %s148, %s149
      %p163 = scmp.eq.s32.totalorder %s26, 1
      %p164 = por %p162, %p163
      %p166 = scmp.ne.s32.totalorder %s149, %s165
      %p167 = scmp.eq.s32.totalorder %s26, 0
      %p168 = por %p166, %p167
      %p169 = scmp.le.s32.totalorder 1, %s20
      %p170 = scmp.lt.s32.totalorder %s20, 3
      %p171 = pnand %p169, %p170
      %p172 = pneg %p171
      // Predicated region
      $region9: #{tpu_custom_call.1} parent=5 // pred_check
        _
      $region10: #{tpu_custom_call.1} parent=5 // pred_check_branch
        %174 = sbr.rel (%p171) target = $region12
      $region11: #{tpu_custom_call.1} parent=5 // pred_region
        %s175 = ssub.s32 %s20, 1
        // Predicated region
        $region13: #{tpu_custom_call.1} parent=11 // pred_check
          %p176 = pneg %p93
        $region14: #{tpu_custom_call.1} parent=11 // pred_check_branch
          %178 = sbr.rel (%p176) target = $region16
        $region15: #{tpu_custom_call.1} parent=11 // pred_region
          %180 = vsyncadd [#allocation6], 0
          %s181 = sshll.u32 %s2, 4
          %s182 = int_to_ptr.hbm [resolvable:$true] %s181
          %s183 = sshll.u32 [#allocation7], 4
          %s184 = int_to_ptr.vmem [resolvable:$true] %s183
          %189 = dma.hbm_to_vmem [thread:$0]  %s182, 256, %s184, [#allocation6], 128, 128, 8
        $region16: #{tpu_custom_call.1} parent=11 // pred_fallthru
          _
        // Predicated region
        $region17: #{tpu_custom_call.1} parent=11 // pred_check
          %p190 = pneg %p114
        $region18: #{tpu_custom_call.1} parent=11 // pred_check_branch
          %192 = sbr.rel (%p190) target = $region20
        $region19: #{tpu_custom_call.1} parent=11 // pred_region
          _
        $region20: #{tpu_custom_call.1} parent=11 // pred_fallthru
          _
        // Predicated region
        $region21: #{tpu_custom_call.1} parent=11 // pred_check
          %p193 = pneg %p135
        $region22: #{tpu_custom_call.1} parent=11 // pred_check_branch
          %195 = sbr.rel (%p193) target = $region24
        $region23: #{tpu_custom_call.1} parent=11 // pred_region
          _
        $region24: #{tpu_custom_call.1} parent=11 // pred_fallthru
          _
      $region12: #{tpu_custom_call.1} parent=5 // pred_fallthru
        _
      %p196 = scmp.lt.s32.totalorder %s20, 2
      // Predicated region
      $region25: #{tpu_custom_call.1} parent=5 // pred_check
        %p197 = pneg %p196
      $region26: #{tpu_custom_call.1} parent=5 // pred_check_branch
        %199 = sbr.rel (%p197) target = $region28
      $region27: #{tpu_custom_call.1} parent=5 // pred_region
        // Predicated region
        $region29: #{tpu_custom_call.1} parent=27 // pred_check
          %p200 = pneg %p40
        $region30: #{tpu_custom_call.1} parent=27 // pred_check_branch
          %202 = sbr.rel (%p200) target = $region32
        $region31: #{tpu_custom_call.1} parent=27 // pred_region
          %s203 = sand.u32 %s30, 1
          %s204 = scalar_lea.sflag [#allocation3], %s203
          %s205 = sand.u32 %s30, 1
          %s206 = smul.addr %s205, 16
          %s207 = scalar_lea.vmem [#allocation2], %s206
          %209 = vsyncadd %s204, 0
          %s210 = smul.addr %s20, 2
          %s211 = smul.addr %s210, 8
          %s212 = scalar_lea.hbm %s0, %s211
          %s213 = sshll.u32 %s212, 4
          %s214 = int_to_ptr.hbm [resolvable:$true] %s213
          %s215 = sshll.u32 %s207, 4
          %s216 = int_to_ptr.vmem [resolvable:$true] %s215
          %221 = dma.hbm_to_vmem [thread:$0]  %s214, 256, %s216, %s204, 128, 128, 8
        $region32: #{tpu_custom_call.1} parent=27 // pred_fallthru
          _
        // Predicated region
        $region33: #{tpu_custom_call.1} parent=27 // pred_check
          %p222 = pneg %p66
        $region34: #{tpu_custom_call.1} parent=27 // pred_check_branch
          %224 = sbr.rel (%p222) target = $region36
        $region35: #{tpu_custom_call.1} parent=27 // pred_region
          %s225 = sand.u32 %s20, 1
          %s226 = scalar_lea.sflag [#allocation6], %s225
          %s227 = sand.u32 %s56, 1
          %s228 = smul.addr %s227, 16
          %s229 = scalar_lea.vmem [#allocation5], %s228
          %231 = vsyncadd %s226, 0
          %s232 = smul.addr %s20, 2
          %s233 = smul.addr %s232, 8
          %s234 = scalar_lea.hbm %s1, %s233
          %s235 = sshll.u32 %s234, 4
          %s236 = int_to_ptr.hbm [resolvable:$true] %s235
          %s237 = sshll.u32 %s229, 4
          %s238 = int_to_ptr.vmem [resolvable:$true] %s237
          %243 = dma.hbm_to_vmem [thread:$0]  %s236, 256, %s238, %s226, 128, 128, 8
        $region36: #{tpu_custom_call.1} parent=27 // pred_fallthru
          _
      $region28: #{tpu_custom_call.1} parent=5 // pred_fallthru
        _
      %p244 = scmp.le.s32.totalorder 1, %s20
      %p245 = scmp.lt.s32.totalorder %s20, 3
      %p246 = pnand %p244, %p245
      %p247 = pneg %p246
      // Predicated region
      $region37: #{tpu_custom_call.1} parent=5 // pred_check
        _
      $region38: #{tpu_custom_call.1} parent=5 // pred_check_branch
        %249 = sbr.rel (%p246) target = $region40
      $region39: #{tpu_custom_call.1} parent=5 // pred_region
        %s250 = ssub.s32 %s20, 1
        %s251 = sand.u32 %s33, 1
        %s252 = scalar_lea.sflag [#allocation3], %s251
        %s253 = sand.u32 %s33, 1
        %s254 = smul.addr %s253, 16
        %s255 = scalar_lea.vmem [#allocation2], %s254
        // Predicated region
        $region41: #{tpu_custom_call.1} parent=39 // pred_check
          %p256 = pneg %p46
        $region42: #{tpu_custom_call.1} parent=39 // pred_check_branch
          %258 = sbr.rel (%p256) target = $region44
        $region43: #{tpu_custom_call.1} parent=39 // pred_region
          %260 = dma.done %s252, 256
        $region44: #{tpu_custom_call.1} parent=39 // pred_fallthru
          _
        %s261 = sand.u32 %s25, 1
        %s262 = scalar_lea.sflag [#allocation6], %s261
        %s263 = sand.u32 %s59, 1
        %s264 = smul.addr %s263, 16
        %s265 = scalar_lea.vmem [#allocation5], %s264
        // Predicated region
        $region45: #{tpu_custom_call.1} parent=39 // pred_check
          %p266 = pneg %p72
        $region46: #{tpu_custom_call.1} parent=39 // pred_check_branch
          %268 = sbr.rel (%p266) target = $region48
        $region47: #{tpu_custom_call.1} parent=39 // pred_region
          %270 = dma.done %s262, 256
        $region48: #{tpu_custom_call.1} parent=39 // pred_fallthru
          _
        // Predicated region
        $region49: #{tpu_custom_call.1} parent=39 // pred_check
          %p271 = pneg %p93
        $region50: #{tpu_custom_call.1} parent=39 // pred_check_branch
          %273 = sbr.rel (%p271) target = $region52
        $region51: #{tpu_custom_call.1} parent=39 // pred_region
          %275 = dma.done [#allocation6], 256
        $region52: #{tpu_custom_call.1} parent=39 // pred_fallthru
          _
        %s276 = sand.u32 %s33, 1
        %s277 = scalar_lea.sflag [#allocation3], %s276
        %s278 = sand.u32 %s33, 1
        %s279 = smul.addr %s278, 16
        %s280 = scalar_lea.vmem [#allocation2], %s279
        %p281 = pneg %p46
        %p282 = pneg %p43
        %s283 = sand.u32 %s25, 1
        %s284 = scalar_lea.sflag [#allocation6], %s283
        %s285 = sand.u32 %s59, 1
        %s286 = smul.addr %s285, 16
        %s287 = scalar_lea.vmem [#allocation5], %s286
        %p288 = pneg %p72
        %p289 = pneg %p69
        %p290 = pneg %p93
        %p291 = pneg %p90
        %p292 = pneg %p114
        %p293 = pneg %p111
        %p294 = pneg %p135
        %p295 = pneg %p132
        %p296 = pneg %p161
        %p297 = pneg %p158
        %s298 = sand.u32 %s148, 1
        %s299 = scalar_lea.sflag [#allocation4], %s298
        %s300 = sand.u32 %s148, 1
        %s301 = smul.addr %s300, 16
        %s302 = scalar_lea.vmem [#allocation8], %s301
        %v303 = vld [vmem:[%s255] sm:$0xff]
        %v304 = vld [vmem:[%s255 + $0x8] sm:$0xff]
        %v305 = vld [vmem:[%s265] sm:$0xff]
        %v306 = vld [vmem:[%s265 + $0x8] sm:$0xff]
        %v307 = vadd.f32 %v303, %v305
        %v308 = vadd.f32 %v304, %v306
        %v309 = vld [vmem:[#allocation7] sm:$0xff]
        %v310 = vld [vmem:[#allocation7 + $0x8] sm:$0xff]
        %v311 = vadd.f32 %v307, %v309
        %v312 = vadd.f32 %v308, %v310
        %vm313 = vcmask 261120
        %v314 = vsel %vm313, %v311, 0.0
        %315 = vadd.xlane.f32.xlu0 %v314
        %v316 = vpop.xlane.xlu0 %315
        %v317 = vsel %vm313, %v312, 0.0
        %318 = vadd.xlane.f32.xlu0 %v317
        %v319 = vpop.xlane.xlu0 %318
        %v320 = vrcp.pop 32.0
        %v321 = vmul.f32 32.0, %v320
        %v322 = vsub.f32 1.0, %v321
        %v323 = vmul.f32 %v320, %v322
        %v324 = vadd.f32 %v320, %v323
        %vm325 = vweird.f32 %v320
        %v326 = vsel %vm325, %v320, %v324
        %v327 = vmul.f32 %v316, %v326
        %v328 = vmul.f32 %v319, %v326
        %v329 = vsub.f32 %v311, %v327
        %v330 = vsub.f32 %v312, %v328
        %v331 = vmul.f32 %v329, %v329
        %v332 = vmul.f32 %v330, %v330
        %v333 = vsel %vm313, %v331, 0.0
        %334 = vadd.xlane.f32.xlu0 %v333
        %v335 = vpop.xlane.xlu0 %334
        %v336 = vsel %vm313, %v332, 0.0
        %337 = vadd.xlane.f32.xlu0 %v336
        %v338 = vpop.xlane.xlu0 %337
        %v339 = vmul.f32 %v335, %v326
        %v340 = vmul.f32 %v338, %v326
        %v341 = vadd.f32 %v339, 1e-06
        %v342 = vadd.f32 %v340, 1e-06
        %v343 = vrsqrt.pop %v341
        %v344 = vmul.f32 %v343, %v341
        %v345 = vmul.f32 %v344, %v343
        %v346 = vmul.f32 0.5, %v345
        %v347 = vsub.f32 1.5, %v346
        %v348 = vmul.f32 %v343, %v347
        %vm349 = vweird.f32 %v341
        %vm350 = vweird.f32 %v343
        %vm351 = vmor %vm349, %vm350
        %v352 = vsel %vm351, %v343, %v348
        %v353 = vrsqrt.pop %v342
        %v354 = vmul.f32 %v353, %v342
        %v355 = vmul.f32 %v354, %v353
        %v356 = vmul.f32 0.5, %v355
        %v357 = vsub.f32 1.5, %v356
        %v358 = vmul.f32 %v353, %v357
        %vm359 = vweird.f32 %v342
        %vm360 = vweird.f32 %v353
        %vm361 = vmor %vm359, %vm360
        %v362 = vsel %vm361, %v353, %v358
        %v363 = vmul.f32 %v329, %v352
        %v364 = vmul.f32 %v330, %v362
        %v365 = vld [vmem:[%s3] sm:$0x1]
        %v367 = vperm.slane %v365, 0
        %v369 = vmul.f32 %v363, %v367
        %v370 = vmul.f32 %v364, %v367
        %v371 = vld [vmem:[%s4] sm:$0x1]
        %v373 = vperm.slane %v371, 0
        %v375 = vadd.f32 %v369, %v373
        %v376 = vadd.f32 %v370, %v373
        %377 = vst.msk [vmem:[%s302] sm:$0xff] %vm313, %v375
        %378 = vst.msk [vmem:[%s302 + $0x8] sm:$0xff] %vm313, %v376
        %s379 = sand.u32 %s148, 1
        %s380 = scalar_lea.sflag [#allocation4], %s379
        %s381 = sand.u32 %s148, 1
        %s382 = smul.addr %s381, 16
        %s383 = scalar_lea.vmem [#allocation8], %s382
        // Predicated region
        $region53: #{tpu_custom_call.1} parent=39 // pred_check
          %p384 = pneg %p158
        $region54: #{tpu_custom_call.1} parent=39 // pred_check_branch
          %386 = sbr.rel (%p384) target = $region56
        $region55: #{tpu_custom_call.1} parent=39 // pred_region
          %388 = vsyncadd %s380, 0
          %s389 = smul.addr %s25, 2
          %s390 = smul.addr %s389, 8
          %s391 = scalar_lea.hbm %s5, %s390
          %s392 = sshll.u32 %s383, 4
          %s393 = int_to_ptr.vmem [resolvable:$true] %s392
          %s394 = sshll.u32 %s391, 4
          %s395 = int_to_ptr.hbm [resolvable:$true] %s394
          %400 = dma.vmem_to_hbm [thread:$0]  %s393, 256, %s395, %s380, 128, 128, 8
        $region56: #{tpu_custom_call.1} parent=39 // pred_fallthru
          _
      $region40: #{tpu_custom_call.1} parent=5 // pred_fallthru
        _
      %p401 = scmp.le.s32.totalorder 2, %s20
      // Predicated region
      $region57: #{tpu_custom_call.1} parent=5 // pred_check
        %p402 = pneg %p401
      $region58: #{tpu_custom_call.1} parent=5 // pred_check_branch
        %404 = sbr.rel (%p402) target = $region60
      $region59: #{tpu_custom_call.1} parent=5 // pred_region
        %s405 = ssub.s32 %s20, 2
        // Predicated region
        $region61: #{tpu_custom_call.1} parent=59 // pred_check
          %p406 = pneg %p164
        $region62: #{tpu_custom_call.1} parent=59 // pred_check_branch
          %408 = sbr.rel (%p406) target = $region64
        $region63: #{tpu_custom_call.1} parent=59 // pred_region
          %s409 = sand.u32 %s149, 1
          %s410 = scalar_lea.sflag [#allocation4], %s409
          %s411 = sand.u32 %s149, 1
          %s412 = smul.addr %s411, 16
          %s413 = scalar_lea.vmem [#allocation8], %s412
          %415 = dma.done %s410, 256
        $region64: #{tpu_custom_call.1} parent=59 // pred_fallthru
          _
      $region60: #{tpu_custom_call.1} parent=5 // pred_fallthru
        _
    $region6: #{tpu_custom_call.1} parent=1 // loop_footer
      %s24 = sadd.s32 1, %s20
    $region7: #{tpu_custom_call.1} parent=1 // loop_footer_branch
      %19 = sbr.rel target = $region3
    $region8: #{tpu_custom_call.1} parent=1 // loop_exit
      _
    %416 = vsyncpa [#allocation3], 1
    %s417 = scalar_lea.sflag [#allocation3], 1
    %418 = vsyncpa %s417, 1
    %419 = vsyncpa [#allocation6], 1
    %s420 = scalar_lea.sflag [#allocation6], 1
    %421 = vsyncpa %s420, 1
    %422 = vsyncpa [#allocation4], 1
    %s423 = scalar_lea.sflag [#allocation4], 1
    %424 = vsyncpa %s423, 1

</llo_original>
